<compile_context>
chip_gen: v7x
topology: tpu7x:2x2x1
jax: 0.10.0
libtpu: 0.0.40
codegen_flags: <defaults>
</compile_context>

<pallas_src>
import math
from functools import partial

import jax
import jax.numpy as jnp
from jax.experimental import pallas as pl
from jax.experimental.pallas import tpu as pltpu


# ---------------------------------------------------------------------------
# Flash path: grid = (B, nq, nk), online softmax over the k axis.
# ---------------------------------------------------------------------------
def _qkv_flash_kernel(q_ref, k_ref, v_ref, o_ref, qs_sc, m_sc, l_sc, acc_sc, *,
                      scale2, kv_len, tk, masked, approx_recip):
    # q_ref/k_ref/v_ref : (C, tq|tk) views of the (B, 3, C, T) tensor (leading
    #                     singleton dims squeezed by the BlockSpec)
    # o_ref             : (C, tq)  output block, resident across the k axis
    # qs_sc             : (C, tq)  pre-scaled q in the input dtype (built once)
    # m_sc, l_sc        : (1, tq)  f32 running max / softmax normalizer
    # acc_sc            : (C, tq)  f32 running weighted sum of V
    ki = pl.program_id(2)

    @pl.when(ki == 0)
    def _():
        # Fold scale*scale = 1/sqrt(C) into q once per q block (q is DMA
        # resident across the whole k axis, so this is not repeated per step).
        qs_sc[...] = (q_ref[...].astype(jnp.float32) * scale2).astype(qs_sc.dtype)
        m_sc[...] = jnp.full(m_sc.shape, -jnp.inf, jnp.float32)
        l_sc[...] = jnp.zeros(l_sc.shape, jnp.float32)
        acc_sc[...] = jnp.zeros(acc_sc.shape, jnp.float32)

    k = k_ref[...]   # (C, tk), input dtype -> bf16 stays bf16 for the MXU
    v = v_ref[...]   # (C, tk)

    # S^T[s, t] = sum_c k[c, s] * q[c, t]  -> MXU matmul, f32 accumulation.
    # TODO(synk): verify via bundle dump that this contraction does not emit a
    # per-step XLU transpose of k; if it does, stage k^T once into scratch.
    s_t = jax.lax.dot_general(
        k, qs_sc[...], (((0,), (0,)), ((), ())), preferred_element_type=jnp.float32
    )                                              # (tk, tq)

    if masked:
        # Keys beyond the true sequence length (padding) must not contribute.
        idx = ki * tk + jax.lax.broadcasted_iota(jnp.int32, s_t.shape, 0)
        s_t = jnp.where(idx < kv_len, s_t, -1e30)

    m_cur = jnp.max(s_t, axis=0, keepdims=True)    # (1, tq)
    m_new = jnp.maximum(m_sc[...], m_cur)
    alpha = jnp.exp(m_sc[...] - m_new)             # (1, tq)
    p_t = jnp.exp(s_t - m_new)                     # (tk, tq), f32

    l_sc[...] = alpha * l_sc[...] + jnp.sum(p_t, axis=0, keepdims=True)
    # acc[c, t] += sum_s v[c, s] * P[t, s] -> V @ P^T, low-precision operands,
    # f32 accumulation.
    acc_sc[...] = alpha * acc_sc[...] + jnp.dot(
        v, p_t.astype(v.dtype), preferred_element_type=jnp.float32
    )
    m_sc[...] = m_new

    @pl.when(ki == pl.num_programs(2) - 1)
    def _():
        if approx_recip:
            inv_l = pl.reciprocal(l_sc[...], approx=True)
            o_ref[...] = (acc_sc[...] * inv_l).astype(o_ref.dtype)
        else:
            # Exact divide for f32 inputs to keep full f32 accuracy.
            o_ref[...] = (acc_sc[...] / l_sc[...]).astype(o_ref.dtype)


# ---------------------------------------------------------------------------
# Grouped path: whole (padded) sequence in one block, G heads per grid step.
# ---------------------------------------------------------------------------
def _qkv_grouped_kernel(q_ref, k_ref, v_ref, o_ref, *,
                        scale2, kv_len, masked, approx_recip):
    # q_ref/k_ref/v_ref : (G, C, T); o_ref : (G, C, T)
    q = q_ref[...]
    k = k_ref[...]
    v = v_ref[...]
    qs = (q.astype(jnp.float32) * scale2).astype(q.dtype)

    # S[g, s, t] = sum_c k[g, c, s] * q[g, c, t]   (batched MXU matmul)
    s = jnp.einsum("gcs,gct->gst", k, qs, preferred_element_type=jnp.float32)
    if masked:
        idx = jax.lax.broadcasted_iota(jnp.int32, s.shape, 1)
        s = jnp.where(idx < kv_len, s, -1e30)

    m = jnp.max(s, axis=1, keepdims=True)          # (G, 1, T)
    p = jnp.exp(s - m)                             # (G, Tk, Tq), f32
    l = jnp.sum(p, axis=1, keepdims=True)          # (G, 1, Tq)

    a = jnp.einsum("gcs,gst->gct", v, p.astype(v.dtype),
                   preferred_element_type=jnp.float32)
    if approx_recip:
        out = a * pl.reciprocal(l, approx=True)
    else:
        out = a / l
    o_ref[...] = out.astype(o_ref.dtype)


# ---------------------------------------------------------------------------
# Tiling helpers
# ---------------------------------------------------------------------------
def _pick_tile(t_pad):
    # Largest MXU/lane-friendly tile that divides the padded length.
    for cand in (1024, 512, 256, 128):
        if t_pad % cand == 0:
            return cand
    return t_pad


def _pick_group(b, t_pad):
    # Heads per grid step for the single-block path.  Keep the f32 (G, T, T)
    # score/prob temporaries within a few MiB, and keep >= 2 grid steps so the
    # parallel grid axis can shard across v7x's two TensorCores.
    budget = 4 * 1024 * 1024
    g_max = max(1, budget // (t_pad * t_pad * 4))
    g_max = min(g_max, 16)
    if b >= 2:
        g_max = min(g_max, max(1, b // 2))
    for cand in range(min(g_max, b), 0, -1):
        if b % cand == 0:
            return cand
    return 1


# ---------------------------------------------------------------------------
# Module wrapper
# ---------------------------------------------------------------------------
class QKVAttentionLegacy:
    """JAX/Pallas port of the PyTorch QKVAttentionLegacy module."""

    def __init__(self, n_heads):
        self.n_heads = n_heads

    def __call__(self, qkv):
        bs, width, length = qkv.shape
        assert width % (3 * self.n_heads) == 0
        ch = width // (3 * self.n_heads)
        b = bs * self.n_heads
        scale2 = 1.0 / math.sqrt(ch)       # (1/ch^0.25)^2 folded into q once
        dtype = qkv.dtype
        approx_recip = jnp.dtype(dtype) != jnp.dtype(jnp.float32)

        # Free reshape: (N, H*3*C, T) -> (B, 3, C, T); q/k/v picked by index maps.
        qkv_r = qkv.reshape(b, 3, ch, length)

        # Pad T to a multiple of 128 (lane-dense stores, aligned matmuls).
        t_pad = ((length + 127) // 128) * 128
        masked = t_pad != length
        if masked:
            qkv_r = jnp.pad(qkv_r, ((0, 0), (0, 0), (0, 0), (0, t_pad - length)))

        tq = _pick_tile(t_pad)
        tk = tq
        nq = t_pad // tq
        nk = t_pad // tk

        cparams = pltpu.CompilerParams(
            dimension_semantics=("parallel",) if (nq == 1 and nk == 1)
            else ("parallel", "parallel", "arbitrary"),
            vmem_limit_bytes=32 * 1024 * 1024,
        )

        if nq == 1 and nk == 1:
            # Small-T / many-heads path: G heads per grid step.
            g = _pick_group(b, t_pad)
            out = pl.pallas_call(
                partial(_qkv_grouped_kernel, scale2=scale2, kv_len=length,
                        masked=masked, approx_recip=approx_recip),
                out_shape=jax.ShapeDtypeStruct((b, ch, t_pad), dtype),
                grid=(b // g,),
                in_specs=[
                    pl.BlockSpec((g, None, ch, t_pad), lambda gi: (gi, 0, 0, 0)),
                    pl.BlockSpec((g, None, ch, t_pad), lambda gi: (gi, 1, 0, 0)),
                    pl.BlockSpec((g, None, ch, t_pad), lambda gi: (gi, 2, 0, 0)),
                ],
                out_specs=pl.BlockSpec((g, ch, t_pad), lambda gi: (gi, 0, 0)),
                compiler_params=cparams,
            )(qkv_r, qkv_r, qkv_r)
        else:
            # Flash path: online softmax over the k axis.
            out = pl.pallas_call(
                partial(_qkv_flash_kernel, scale2=scale2, kv_len=length, tk=tk,
                        masked=masked, approx_recip=approx_recip),
                out_shape=jax.ShapeDtypeStruct((b, ch, t_pad), dtype),
                grid=(b, nq, nk),
                in_specs=[
                    pl.BlockSpec((None, None, ch, tq),
                                 lambda bi, qi, ki: (bi, 0, 0, qi)),
                    pl.BlockSpec((None, None, ch, tk),
                                 lambda bi, qi, ki: (bi, 1, 0, ki)),
                    pl.BlockSpec((None, None, ch, tk),
                                 lambda bi, qi, ki: (bi, 2, 0, ki)),
                ],
                out_specs=pl.BlockSpec((None, ch, tq),
                                       lambda bi, qi, ki: (bi, 0, qi)),
                scratch_shapes=[
                    pltpu.VMEM((ch, tq), dtype),        # pre-scaled q
                    pltpu.VMEM((1, tq), jnp.float32),   # running max
                    pltpu.VMEM((1, tq), jnp.float32),   # running normalizer
                    pltpu.VMEM((ch, tq), jnp.float32),  # f32 output accumulator
                ],
                compiler_params=cparams,
            )(qkv_r, qkv_r, qkv_r)

        if masked:
            out = out[:, :, :length]
        # Free reshape back: (B, C, T) -> (N, H*C, T)
        return out.reshape(bs, self.n_heads * ch, length)


# ---------------------------------------------------------------------------
# Pure-JAX reference (transcription of the PyTorch forward)
# ---------------------------------------------------------------------------
def _reference(qkv, n_heads):
    bs, width, length = qkv.shape
    ch = width // (3 * n_heads)
    qkv_r = qkv.reshape(bs * n_heads, 3 * ch, length)
    q, k, v = qkv_r[:, :ch], qkv_r[:, ch:2 * ch], qkv_r[:, 2 * ch:]
    scale = 1.0 / math.sqrt(math.sqrt(ch))
    w = jnp.einsum(
        "bct,bcs->bts",
        (q * scale).astype(jnp.float32),
        (k * scale).astype(jnp.float32),
    )
    w = jax.nn.softmax(w.astype(jnp.float32), axis=-1).astype(qkv.dtype)
    a = jnp.einsum("bts,bcs->bct", w, v)
    return a.reshape(bs, -1, length)


if __name__ == "__main__":
    key = jax.random.PRNGKey(0)
    k1, k2, k3 = jax.random.split(key, 3)

    # 1) Tiny T (padded to 128 + key masking), grouped-heads single-block path.
    n, heads, ch, t = 2, 2, 16, 8
    qkv = jax.random.normal(k1, (n, heads * 3 * ch, t), jnp.float32)
    out = jax.block_until_ready(QKVAttentionLegacy(heads)(qkv))
    ref = _reference(qkv, heads)
    assert out.shape == (n, heads * ch, t), out.shape
    assert jnp.allclose(out, ref, atol=1e-3, rtol=1e-3), float(
        jnp.max(jnp.abs(out - ref)))

    # 2) Multi-block flash path (T=384 -> 3 k-blocks), exact 128 tiling, f32.
    n, heads, ch, t = 1, 2, 32, 384
    qkv = jax.random.normal(k2, (n, heads * 3 * ch, t), jnp.float32)
    out = jax.block_until_ready(QKVAttentionLegacy(heads)(qkv))
    ref = _reference(qkv, heads)
    assert out.shape == (n, heads * ch, t), out.shape
    assert jnp.allclose(out, ref, atol=1e-3, rtol=1e-3), float(
        jnp.max(jnp.abs(out - ref)))

    # 3) bf16 inputs, ragged T (padded + masked) on the flash path: exercises
    #    bf16 MXU operands + approx reciprocal epilogue.
    n, heads, ch, t = 1, 3, 32, 300
    qkv = jax.random.normal(k3, (n, heads * 3 * ch, t), jnp.float32).astype(
        jnp.bfloat16)
    out = jax.block_until_ready(QKVAttentionLegacy(heads)(qkv))
    ref = _reference(qkv, heads)
    assert out.shape == (n, heads * ch, t), out.shape
    assert jnp.allclose(out.astype(jnp.float32), ref.astype(jnp.float32),
                        atol=3e-2, rtol=3e-2), float(
        jnp.max(jnp.abs(out.astype(jnp.float32) - ref.astype(jnp.float32))))

    print("KERNEL_OK")
</pallas_src>

<mosaic_0001>
module attributes {stable_mosaic.version = 11 : i64} {
  func.func @_qkv_grouped_kernel(%arg0: i32, %arg1: memref<2x1x16x128xf32, #tpu.memory_space<vmem>>, %arg2: memref<2x1x16x128xf32, #tpu.memory_space<vmem>>, %arg3: memref<2x1x16x128xf32, #tpu.memory_space<vmem>>, %arg4: memref<2x16x128xf32, #tpu.memory_space<vmem>>) attributes {dimension_semantics = [#tpu.dimension_semantics<parallel>], iteration_bounds = array<i64: 2>, scalar_prefetch = 0 : i64, scratch_operands = 0 : i64, tpu.core_type = #tpu.core_type<tc>, window_params = [{transform_indices = @transform_0, window_bounds = array<i64: 2, 1, 16, 128>}, {transform_indices = @transform_1, window_bounds = array<i64: 2, 1, 16, 128>}, {transform_indices = @transform_2, window_bounds = array<i64: 2, 1, 16, 128>}, {transform_indices = @transform_3, window_bounds = array<i64: 2, 16, 128>}]} {
    %c0 = arith.constant 0 : index
    %c0_0 = arith.constant 0 : index
    %c0_1 = arith.constant 0 : index
    %c0_2 = arith.constant 0 : index
    %0 = vector.load %arg1[%c0, %c0_0, %c0_1, %c0_2] : memref<2x1x16x128xf32, #tpu.memory_space<vmem>>, vector<2x1x16x128xf32>
    %1 = vector.shape_cast %0 : vector<2x1x16x128xf32> to vector<2x16x128xf32>
    %c0_3 = arith.constant 0 : index
    %c0_4 = arith.constant 0 : index
    %c0_5 = arith.constant 0 : index
    %c0_6 = arith.constant 0 : index
    %2 = vector.load %arg2[%c0_3, %c0_4, %c0_5, %c0_6] : memref<2x1x16x128xf32, #tpu.memory_space<vmem>>, vector<2x1x16x128xf32>
    %3 = vector.shape_cast %2 : vector<2x1x16x128xf32> to vector<2x16x128xf32>
    %c0_7 = arith.constant 0 : index
    %c0_8 = arith.constant 0 : index
    %c0_9 = arith.constant 0 : index
    %c0_10 = arith.constant 0 : index
    %4 = vector.load %arg3[%c0_7, %c0_8, %c0_9, %c0_10] : memref<2x1x16x128xf32, #tpu.memory_space<vmem>>, vector<2x1x16x128xf32>
    %5 = vector.shape_cast %4 : vector<2x1x16x128xf32> to vector<2x16x128xf32>
    %cst = arith.constant 2.500000e-01 : f32
    %6 = vector.broadcast %cst : f32 to vector<2x16x128xf32>
    %7 = arith.mulf %1, %6 : vector<2x16x128xf32>
    "tpu.trace_start"() <{level = 10 : i32, message = "gcs,gct->gst"}> : () -> ()
    %cst_11 = arith.constant dense<0.000000e+00> : vector<2x128x128xf32>
    %8 = tpu.matmul %3, %7, %cst_11 {dimension_numbers = #tpu.dot_dimension_numbers<[1], [1], [2], [2], [0, 0, 0, 2, 1, 2], [0], [0]>} : vector<2x16x128xf32>, vector<2x16x128xf32>, vector<2x128x128xf32> -> vector<2x128x128xf32>
    "tpu.trace_stop"() : () -> ()
    %9 = tpu.iota {dimensions = array<i32: 1>} : vector<2x128x128xi32>
    %c8_i32 = arith.constant 8 : i32
    %10 = vector.broadcast %c8_i32 : i32 to vector<2x128x128xi32>
    %11 = arith.cmpi slt, %9, %10 : vector<2x128x128xi32>
    %cst_12 = arith.constant -1.000000e+30 : f32
    %12 = vector.broadcast %cst_12 : f32 to vector<2x128x128xf32>
    %13 = arith.select %11, %8, %12 : vector<2x128x128xi1>, vector<2x128x128xf32>
    %cst_13 = arith.constant dense<0xFF800000> : vector<2x128xf32>
    %14 = vector.multi_reduction <maximumf>, %13, %cst_13 [1] : vector<2x128x128xf32> to vector<2x128xf32>
    %15 = vector.shape_cast %14 : vector<2x128xf32> to vector<2x1x128xf32>
    %16 = vector.broadcast %15 : vector<2x1x128xf32> to vector<2x128x128xf32>
    %17 = arith.subf %13, %16 : vector<2x128x128xf32>
    %18 = math.exp %17 : vector<2x128x128xf32>
    %cst_14 = arith.constant dense<0.000000e+00> : vector<2x128xf32>
    %19 = vector.multi_reduction <add>, %18, %cst_14 [1] : vector<2x128x128xf32> to vector<2x128xf32>
    %20 = vector.shape_cast %19 : vector<2x128xf32> to vector<2x1x128xf32>
    "tpu.trace_start"() <{level = 10 : i32, message = "gcs,gst->gct"}> : () -> ()
    %cst_15 = arith.constant dense<0.000000e+00> : vector<2x16x128xf32>
    %21 = tpu.matmul %5, %18, %cst_15 {dimension_numbers = #tpu.dot_dimension_numbers<[2], [1], [1], [2], [0, 0, 0, 1, 1, 2], [0], [0]>} : vector<2x16x128xf32>, vector<2x128x128xf32>, vector<2x16x128xf32> -> vector<2x16x128xf32>
    "tpu.trace_stop"() : () -> ()
    %22 = vector.broadcast %20 : vector<2x1x128xf32> to vector<2x16x128xf32>
    %23 = arith.divf %21, %22 : vector<2x16x128xf32>
    %c0_16 = arith.constant 0 : index
    %c0_17 = arith.constant 0 : index
    %c0_18 = arith.constant 0 : index
    %24 = vector.load %arg4[%c0_16, %c0_17, %c0_18] : memref<2x16x128xf32, #tpu.memory_space<vmem>>, vector<2x16x128xf32>
    tpu.vector_store %arg4[%c0_16, %c0_17, %c0_18], %23 {strides = array<i32>} : memref<2x16x128xf32, #tpu.memory_space<vmem>>, vector<2x16x128xf32>,
    return
  }
  func.func @transform_0(%arg0: i32) -> (i32, i32, i32, i32) {
    %c0_i32 = arith.constant 0 : i32
    %c0_i32_0 = arith.constant 0 : i32
    %c0_i32_1 = arith.constant 0 : i32
    %c0_i32_2 = arith.constant 0 : i32
    return %arg0, %c0_i32, %c0_i32_0, %c0_i32_1 : i32, i32, i32, i32
  }
  func.func @transform_1(%arg0: i32) -> (i32, i32, i32, i32) {
    %c1_i32 = arith.constant 1 : i32
    %c0_i32 = arith.constant 0 : i32
    %c0_i32_0 = arith.constant 0 : i32
    %c0_i32_1 = arith.constant 0 : i32
    return %arg0, %c1_i32, %c0_i32, %c0_i32_0 : i32, i32, i32, i32
  }
  func.func @transform_2(%arg0: i32) -> (i32, i32, i32, i32) {
    %c2_i32 = arith.constant 2 : i32
    %c0_i32 = arith.constant 0 : i32
    %c0_i32_0 = arith.constant 0 : i32
    %c0_i32_1 = arith.constant 0 : i32
    return %arg0, %c2_i32, %c0_i32, %c0_i32_0 : i32, i32, i32, i32
  }
  func.func @transform_3(%arg0: i32) -> (i32, i32, i32) {
    %c0_i32 = arith.constant 0 : i32
    %c0_i32_0 = arith.constant 0 : i32
    %c0_i32_1 = arith.constant 0 : i32
    return %arg0, %c0_i32, %c0_i32_0 : i32, i32, i32
  }
}

</mosaic_0001>

<llo_original>
// kernel: tpu_custom_call.1
$region0: #{tpu_custom_call.1}
  #allocation0 [shape = 'u32[]', space=smem, size = 0x4, offset = 0x4, fixed_abs, tag = 'smem constant byte address 0x4 - core index']
  #allocation1 [shape = 'u32[144,128]{1,0:T(1,128)}', space=vmem, size = 0x12000, scoped, tag = 'internal scratch']
  #allocation9 [shape = 's32[]', space=sflag, size = 0x4, offset = 0, fixed_abs, tag = 'sflag constant byte address 0x0 - dummy sync flag']
  #allocation11 [shape = 's32[]', space=sflag, size = 0x4, offset = 0, fixed_abs, tag = 'sflag constant byte address 0x0 - dummy sync flag']
  #allocation13 [shape = 's32[]', space=sflag, size = 0x4, offset = 0, fixed_abs, tag = 'sflag constant byte address 0x0 - dummy sync flag']
  %s0 = inlined_call_operand.hbm [shape: f32[4,3,16,128], index: 0, kind: input, shape index: {}]
  %s1 = inlined_call_operand.hbm [shape: f32[4,3,16,128], index: 1, kind: input, shape index: {}]
  %s2 = inlined_call_operand.hbm [shape: f32[4,3,16,128], index: 2, kind: input, shape index: {}]
  %s3 = inlined_call_operand.hbm [shape: f32[4,16,128], index: 3, kind: output, shape index: {}]
  %s4 = sld [smem:[#allocation0]]
  $region57: #{tpu_custom_call.1} parent=0
    _
  %s6 = ssub.s32 1, %s4
  %s7 = scalar_select 0, %s6, %s4
  $region1: #{tpu_custom_call.1} parent=0
    #allocation2 [shape = 'u8[32768]{0}', space=vmem, size = 0x8000, scoped, tag = 'input window, operand 0']
    #allocation3 [shape = 's32[2]{0}', space=sflag, size = 0x8, scoped, tag = 'scoped memory for tpu_custom_call.1']
    #allocation4 [shape = 's32[2]{0}', space=sflag, size = 0x8, scoped, tag = 'scoped memory for tpu_custom_call.1']
    #allocation5 [shape = 'u8[32768]{0}', space=vmem, size = 0x8000, scoped, tag = 'input window, operand 1']
    #allocation6 [shape = 's32[2]{0}', space=sflag, size = 0x8, scoped, tag = 'scoped memory for tpu_custom_call.1']
    #allocation7 [shape = 'u8[32768]{0}', space=vmem, size = 0x8000, scoped, tag = 'input window, operand 2']
    #allocation8 [shape = 'u8[32768]{0}', space=vmem, size = 0x8000, scoped, tag = 'output window, operand 0']
    %8 = vsyncpa [#allocation3], 0
    %s9 = scalar_lea.sflag [#allocation3], 1
    %10 = vsyncpa %s9, 0
    %11 = vsyncpa [#allocation6], 0
    %s12 = scalar_lea.sflag [#allocation6], 1
    %13 = vsyncpa %s12, 0
    %14 = vsyncpa [#allocation4], 0
    %s15 = scalar_lea.sflag [#allocation4], 1
    %16 = vsyncpa %s15, 0
    loop: start=0, step=1, limit=4
    $region2: #{tpu_custom_call.1} parent=1 // loop_pre_header
      _
    $region3: #{tpu_custom_call.1} parent=1 // loop_header
      %s18 = sphi 0, %s22
      %p19 = scmp.ge.s32.totalorder %s18, 4
      %s28 = sphi 0, %s30
      %s31 = sphi 0, %s28
      %s32 = sphi 0, %s31
      %s48 = sphi 0, %s32
      %s54 = sphi 0, %s56
      %s57 = sphi 0, %s54
      %s58 = sphi 0, %s57
      %s74 = sphi 0, %s58
      %s80 = sphi 0, %s82
      %s83 = sphi 0, %s80
      %s84 = sphi 0, %s83
      %s100 = sphi 0, %s84
      %s106 = sphi 0, %s108
      %s109 = sphi 0, %s106
      %s110 = sphi 0, %s109
      %s126 = sphi 0, %s110
    $region4: #{tpu_custom_call.1} parent=1 // loop_header_branch
      %21 = sbr.rel (%p19) target = $region8
    $region5: #{tpu_custom_call.1} parent=1 // loop_body
      %s23 = ssub.s32 %s18, 1
      %s24 = ssub.s32 %s18, 2
      %s25 = sadd.s32 %s18, 1
      %s26 = ssub.s32 %s18, %s25
      %p27 = scmp.eq.s32.totalorder %s26, 0
      %s29 = sadd.s32 %s28, 1
      %s30 = scalar_select %p27, %s28, %s29
      %p33 = pneg %p27
      %p34 = scmp.eq.s32.totalorder %s18, 1
      %p35 = por %p33, %p34
      %p36 = scmp.ne.s32.totalorder %s28, %s31
      %p37 = scmp.eq.s32.totalorder %s18, 0
      %p38 = por %p36, %p37
      %p39 = scmp.ne.s32.totalorder %s28, %s31
      %p40 = scmp.eq.s32.totalorder %s23, 1
      %p41 = por %p39, %p40
      %p42 = scmp.ne.s32.totalorder %s31, %s32
      %p43 = scmp.eq.s32.totalorder %s23, 0
      %p44 = por %p42, %p43
      %p45 = scmp.ne.s32.totalorder %s31, %s32
      %p46 = scmp.eq.s32.totalorder %s24, 1
      %p47 = por %p45, %p46
      %p49 = scmp.ne.s32.totalorder %s32, %s48
      %p50 = scmp.eq.s32.totalorder %s24, 0
      %p51 = por %p49, %p50
      %s52 = ssub.s32 %s18, %s25
      %p53 = scmp.eq.s32.totalorder %s52, 0
      %s55 = sadd.s32 %s54, 1
      %s56 = scalar_select %p53, %s54, %s55
      %p59 = pneg %p53
      %p60 = scmp.eq.s32.totalorder %s18, 1
      %p61 = por %p59, %p60
      %p62 = scmp.ne.s32.totalorder %s54, %s57
      %p63 = scmp.eq.s32.totalorder %s18, 0
      %p64 = por %p62, %p63
      %p65 = scmp.ne.s32.totalorder %s54, %s57
      %p66 = scmp.eq.s32.totalorder %s23, 1
      %p67 = por %p65, %p66
      %p68 = scmp.ne.s32.totalorder %s57, %s58
      %p69 = scmp.eq.s32.totalorder %s23, 0
      %p70 = por %p68, %p69
      %p71 = scmp.ne.s32.totalorder %s57, %s58
      %p72 = scmp.eq.s32.totalorder %s24, 1
      %p73 = por %p71, %p72
      %p75 = scmp.ne.s32.totalorder %s58, %s74
      %p76 = scmp.eq.s32.totalorder %s24, 0
      %p77 = por %p75, %p76
      %s78 = ssub.s32 %s18, %s25
      %p79 = scmp.eq.s32.totalorder %s78, 0
      %s81 = sadd.s32 %s80, 1
      %s82 = scalar_select %p79, %s80, %s81
      %p85 = pneg %p79
      %p86 = scmp.eq.s32.totalorder %s18, 1
      %p87 = por %p85, %p86
      %p88 = scmp.ne.s32.totalorder %s80, %s83
      %p89 = scmp.eq.s32.totalorder %s18, 0
      %p90 = por %p88, %p89
      %p91 = scmp.ne.s32.totalorder %s80, %s83
      %p92 = scmp.eq.s32.totalorder %s23, 1
      %p93 = por %p91, %p92
      %p94 = scmp.ne.s32.totalorder %s83, %s84
      %p95 = scmp.eq.s32.totalorder %s23, 0
      %p96 = por %p94, %p95
      %p97 = scmp.ne.s32.totalorder %s83, %s84
      %p98 = scmp.eq.s32.totalorder %s24, 1
      %p99 = por %p97, %p98
      %p101 = scmp.ne.s32.totalorder %s84, %s100
      %p102 = scmp.eq.s32.totalorder %s24, 0
      %p103 = por %p101, %p102
      %s104 = ssub.s32 %s18, %s25
      %p105 = scmp.eq.s32.totalorder %s104, 0
      %s107 = sadd.s32 %s106, 1
      %s108 = scalar_select %p105, %s106, %s107
      %p111 = pneg %p105
      %p112 = scmp.eq.s32.totalorder %s18, 1
      %p113 = por %p111, %p112
      %p114 = scmp.ne.s32.totalorder %s106, %s109
      %p115 = scmp.eq.s32.totalorder %s18, 0
      %p116 = por %p114, %p115
      %p117 = scmp.ne.s32.totalorder %s106, %s109
      %p118 = scmp.eq.s32.totalorder %s23, 1
      %p119 = por %p117, %p118
      %p120 = scmp.ne.s32.totalorder %s109, %s110
      %p121 = scmp.eq.s32.totalorder %s23, 0
      %p122 = por %p120, %p121
      %p123 = scmp.ne.s32.totalorder %s109, %s110
      %p124 = scmp.eq.s32.totalorder %s24, 1
      %p125 = por %p123, %p124
      %p127 = scmp.ne.s32.totalorder %s110, %s126
      %p128 = scmp.eq.s32.totalorder %s24, 0
      %p129 = por %p127, %p128
      %p130 = scmp.le.s32.totalorder 1, %s18
      %p131 = scmp.lt.s32.totalorder %s18, 3
      %p132 = pnand %p130, %p131
      %p133 = pneg %p132
      // Predicated region
      $region9: #{tpu_custom_call.1} parent=5 // pred_check
        _
      $region10: #{tpu_custom_call.1} parent=5 // pred_check_branch
        %135 = sbr.rel (%p132) target = $region12
      $region11: #{tpu_custom_call.1} parent=5 // pred_region
        %s136 = ssub.s32 %s18, 1
      $region12: #{tpu_custom_call.1} parent=5 // pred_fallthru
        _
      %p137 = scmp.lt.s32.totalorder %s18, 2
      // Predicated region
      $region13: #{tpu_custom_call.1} parent=5 // pred_check
        %p138 = pneg %p137
      $region14: #{tpu_custom_call.1} parent=5 // pred_check_branch
        %140 = sbr.rel (%p138) target = $region16
      $region15: #{tpu_custom_call.1} parent=5 // pred_region
        // Predicated region
        $region17: #{tpu_custom_call.1} parent=15 // pred_check
          %p141 = pneg %p38
        $region18: #{tpu_custom_call.1} parent=15 // pred_check_branch
          %143 = sbr.rel (%p141) target = $region20
        $region19: #{tpu_custom_call.1} parent=15 // pred_region
          #allocation10 [shape = 'u32[6]{0}', space=smem, size = 0x18, scoped, tag = 'DMA stride descriptor']
          %s144 = sand.u32 %s28, 1
          %s145 = scalar_lea.sflag [#allocation3], %s144
          %s146 = sand.u32 %s28, 1
          %s147 = smul.addr %s146, 32
          %s148 = scalar_lea.vmem [#allocation2], %s147
          %s149 = smul.u32 2, %s18
          %s151 = ssub.s32 512, 512
          %152 = vsyncadd %s145, %s151
          %s153 = smul.addr %s149, 6
          %s154 = smul.addr %s153, 128
          %s155 = scalar_lea.hbm %s0, %s154
          %s157 = sshll.u32 1, 14
          %s158 = sxor.u32 4294967295, %s157
          %s160 = sld [smem:[#allocation0]]
          %s161 = sadd.s32 2, %s160
          %s163 = sshll.u32 7, 26
          %s164 = sxor.u32 4294967295, %s163
          %s165 = sand.u32 0, %s164
          %s166 = sshll.u32 %s161, 26
          %s167 = sor.u32 %s165, %s166
          %s168 = sshll.u32 %s148, 4
          %s169 = int_to_ptr.vmem [resolvable:$true] %s168
          %175 = sst [smem:[#allocation10]] 768
          %s176 = scalar_lea.smem [#allocation10], 1
          %177 = sst [smem:[%s176]] 256
          %s178 = scalar_lea.smem [#allocation10], 2
          %179 = sst [smem:[%s178]] 2
          %s180 = scalar_lea.smem [#allocation10], 3
          %181 = sst [smem:[%s180]] 128
          %s182 = scalar_lea.smem [#allocation10], 4
          %183 = sst [smem:[%s182]] 128
          %s184 = scalar_lea.smem [#allocation10], 5
          %185 = sst [smem:[%s184]] 8
          %187 = dma.general %s155, 512, %s169, %s145, [#allocation9], [#allocation10], %s167, 0
        $region20: #{tpu_custom_call.1} parent=15 // pred_fallthru
          _
        // Predicated region
        $region21: #{tpu_custom_call.1} parent=15 // pred_check
          %p188 = pneg %p64
        $region22: #{tpu_custom_call.1} parent=15 // pred_check_branch
          %190 = sbr.rel (%p188) target = $region24
        $region23: #{tpu_custom_call.1} parent=15 // pred_region
          #allocation12 [shape = 'u32[6]{0}', space=smem, size = 0x18, scoped, tag = 'DMA stride descriptor']
          %s191 = sand.u32 %s18, 1
          %s192 = scalar_lea.sflag [#allocation6], %s191
          %s193 = sand.u32 %s54, 1
          %s194 = smul.addr %s193, 32
          %s195 = scalar_lea.vmem [#allocation5], %s194
          %s196 = smul.u32 2, %s18
          %s198 = ssub.s32 512, 512
          %199 = vsyncadd %s192, %s198
          %s200 = smul.addr %s196, 6
          %s201 = sadd.s32 2, %s200
          %s202 = smul.addr %s201, 128
          %s203 = scalar_lea.hbm %s1, %s202
          %s205 = sshll.u32 1, 14
          %s206 = sxor.u32 4294967295, %s205
          %s208 = sld [smem:[#allocation0]]
          %s209 = sadd.s32 2, %s208
          %s211 = sshll.u32 7, 26
          %s212 = sxor.u32 4294967295, %s211
          %s213 = sand.u32 0, %s212
          %s214 = sshll.u32 %s209, 26
          %s215 = sor.u32 %s213, %s214
          %s216 = sshll.u32 %s195, 4
          %s217 = int_to_ptr.vmem [resolvable:$true] %s216
          %223 = sst [smem:[#allocation12]] 768
          %s224 = scalar_lea.smem [#allocation12], 1
          %225 = sst [smem:[%s224]] 256
          %s226 = scalar_lea.smem [#allocation12], 2
          %227 = sst [smem:[%s226]] 2
          %s228 = scalar_lea.smem [#allocation12], 3
          %229 = sst [smem:[%s228]] 128
          %s230 = scalar_lea.smem [#allocation12], 4
          %231 = sst [smem:[%s230]] 128
          %s232 = scalar_lea.smem [#allocation12], 5
          %233 = sst [smem:[%s232]] 8
          %235 = dma.general %s203, 512, %s217, %s192, [#allocation11], [#allocation12], %s215, 0
        $region24: #{tpu_custom_call.1} parent=15 // pred_fallthru
          _
        // Predicated region
        $region25: #{tpu_custom_call.1} parent=15 // pred_check
          %p236 = pneg %p90
        $region26: #{tpu_custom_call.1} parent=15 // pred_check_branch
          %238 = sbr.rel (%p236) target = $region28
        $region27: #{tpu_custom_call.1} parent=15 // pred_region
          #allocation14 [shape = 'u32[6]{0}', space=smem, size = 0x18, scoped, tag = 'DMA stride descriptor']
          %s239 = sand.u32 %s18, 1
          %s240 = scalar_lea.sflag [#allocation6], %s239
          %s241 = sand.u32 %s80, 1
          %s242 = smul.addr %s241, 32
          %s243 = scalar_lea.vmem [#allocation7], %s242
          %s244 = smul.u32 2, %s18
          %s246 = ssub.s32 512, 512
          %247 = vsyncadd %s240, %s246
          %s248 = smul.addr %s244, 6
          %s249 = sadd.s32 4, %s248
          %s250 = smul.addr %s249, 128
          %s251 = scalar_lea.hbm %s2, %s250
          %s253 = sshll.u32 1, 14
          %s254 = sxor.u32 4294967295, %s253
          %s256 = sld [smem:[#allocation0]]
          %s257 = sadd.s32 2, %s256
          %s259 = sshll.u32 7, 26
          %s260 = sxor.u32 4294967295, %s259
          %s261 = sand.u32 0, %s260
          %s262 = sshll.u32 %s257, 26
          %s263 = sor.u32 %s261, %s262
          %s264 = sshll.u32 %s243, 4
          %s265 = int_to_ptr.vmem [resolvable:$true] %s264
          %271 = sst [smem:[#allocation14]] 768
          %s272 = scalar_lea.smem [#allocation14], 1
          %273 = sst [smem:[%s272]] 256
          %s274 = scalar_lea.smem [#allocation14], 2
          %275 = sst [smem:[%s274]] 2
          %s276 = scalar_lea.smem [#allocation14], 3
          %277 = sst [smem:[%s276]] 128
          %s278 = scalar_lea.smem [#allocation14], 4
          %279 = sst [smem:[%s278]] 128
          %s280 = scalar_lea.smem [#allocation14], 5
          %281 = sst [smem:[%s280]] 8
          %283 = dma.general %s251, 512, %s265, %s240, [#allocation13], [#allocation14], %s263, 0
        $region28: #{tpu_custom_call.1} parent=15 // pred_fallthru
          _
      $region16: #{tpu_custom_call.1} parent=5 // pred_fallthru
        _
      %p284 = scmp.le.s32.totalorder 1, %s18
      %p285 = scmp.lt.s32.totalorder %s18, 3
      %p286 = pnand %p284, %p285
      %p287 = pneg %p286
      // Predicated region
      $region29: #{tpu_custom_call.1} parent=5 // pred_check
        _
      $region30: #{tpu_custom_call.1} parent=5 // pred_check_branch
        %289 = sbr.rel (%p286) target = $region32
      $region31: #{tpu_custom_call.1} parent=5 // pred_region
        %s290 = ssub.s32 %s18, 1
        %s291 = sand.u32 %s31, 1
        %s292 = scalar_lea.sflag [#allocation3], %s291
        %s293 = sand.u32 %s31, 1
        %s294 = smul.addr %s293, 32
        %s295 = scalar_lea.vmem [#allocation2], %s294
        // Predicated region
        $region33: #{tpu_custom_call.1} parent=31 // pred_check
          %p296 = pneg %p44
        $region34: #{tpu_custom_call.1} parent=31 // pred_check_branch
          %298 = sbr.rel (%p296) target = $region36
        $region35: #{tpu_custom_call.1} parent=31 // pred_region
          %299 = dma.done %s292, 512
        $region36: #{tpu_custom_call.1} parent=31 // pred_fallthru
          _
        %s300 = sand.u32 %s23, 1
        %s301 = scalar_lea.sflag [#allocation6], %s300
        %s302 = sand.u32 %s57, 1
        %s303 = smul.addr %s302, 32
        %s304 = scalar_lea.vmem [#allocation5], %s303
        // Predicated region
        $region37: #{tpu_custom_call.1} parent=31 // pred_check
          %p305 = pneg %p70
        $region38: #{tpu_custom_call.1} parent=31 // pred_check_branch
          %307 = sbr.rel (%p305) target = $region40
        $region39: #{tpu_custom_call.1} parent=31 // pred_region
          %308 = dma.done %s301, 512
        $region40: #{tpu_custom_call.1} parent=31 // pred_fallthru
          _
        %s309 = sand.u32 %s23, 1
        %s310 = scalar_lea.sflag [#allocation6], %s309
        %s311 = sand.u32 %s83, 1
        %s312 = smul.addr %s311, 32
        %s313 = scalar_lea.vmem [#allocation7], %s312
        // Predicated region
        $region41: #{tpu_custom_call.1} parent=31 // pred_check
          %p314 = pneg %p96
        $region42: #{tpu_custom_call.1} parent=31 // pred_check_branch
          %316 = sbr.rel (%p314) target = $region44
        $region43: #{tpu_custom_call.1} parent=31 // pred_region
          %317 = dma.done %s310, 512
        $region44: #{tpu_custom_call.1} parent=31 // pred_fallthru
          _
        %s318 = sand.u32 %s31, 1
        %s319 = scalar_lea.sflag [#allocation3], %s318
        %s320 = sand.u32 %s31, 1
        %s321 = smul.addr %s320, 32
        %s322 = scalar_lea.vmem [#allocation2], %s321
        %p323 = pneg %p44
        %p324 = pneg %p41
        %s325 = sand.u32 %s23, 1
        %s326 = scalar_lea.sflag [#allocation6], %s325
        %s327 = sand.u32 %s57, 1
        %s328 = smul.addr %s327, 32
        %s329 = scalar_lea.vmem [#allocation5], %s328
        %p330 = pneg %p70
        %p331 = pneg %p67
        %s332 = sand.u32 %s23, 1
        %s333 = scalar_lea.sflag [#allocation6], %s332
        %s334 = sand.u32 %s83, 1
        %s335 = smul.addr %s334, 32
        %s336 = scalar_lea.vmem [#allocation7], %s335
        %p337 = pneg %p96
        %p338 = pneg %p93
        %p339 = pneg %p122
        %p340 = pneg %p119
        %s341 = sand.u32 %s109, 1
        %s342 = scalar_lea.sflag [#allocation4], %s341
        %s343 = sand.u32 %s109, 1
        %s344 = smul.addr %s343, 32
        %s345 = scalar_lea.vmem [#allocation8], %s344
        %s346 = smul.u32 2, %s23
        %s347 = smul.u32 2, %s23
        %s348 = smul.u32 2, %s23
        %s349 = smul.u32 2, %s23
        %v350 = vld [vmem:[%s295] sm:$0xff]
        %v351 = vld [vmem:[%s295 + $0x8] sm:$0xff]
        %v352 = vld [vmem:[%s295 + $0x10] sm:$0xff]
        %v353 = vld [vmem:[%s295 + $0x18] sm:$0xff]
        %v354 = vld [vmem:[%s304] sm:$0xff]
        %v355 = vld [vmem:[%s304 + $0x8] sm:$0xff]
        %v356 = vld [vmem:[%s304 + $0x10] sm:$0xff]
        %v357 = vld [vmem:[%s304 + $0x18] sm:$0xff]
        %v358 = vld [vmem:[%s313] sm:$0xff]
        %v359 = vld [vmem:[%s313 + $0x8] sm:$0xff]
        %v360 = vld [vmem:[%s313 + $0x10] sm:$0xff]
        %v361 = vld [vmem:[%s313 + $0x18] sm:$0xff]
        %v362 = vmul.f32 %v350, 0.25
        %v363 = vmul.f32 %v351, 0.25
        %v364 = vmul.f32 %v352, 0.25
        %v365 = vmul.f32 %v353, 0.25
        %366 = vxpose.xlu0.b32.start [1/16] %v354, 128
        %367 = vxpose.xlu0.b32.cont [2/16] %v355, 128
        %368 = vxpose.xlu0.b32.cont [3/16] 0.0, 128
        %369 = vxpose.xlu0.b32.cont [4/16] 0.0, 128
        %370 = vxpose.xlu0.b32.cont [5/16] 0.0, 128
        %371 = vxpose.xlu0.b32.cont [6/16] 0.0, 128
        %372 = vxpose.xlu0.b32.cont [7/16] 0.0, 128
        %373 = vxpose.xlu0.b32.cont [8/16] 0.0, 128
        %374 = vxpose.xlu0.b32.cont [9/16] 0.0, 128
        %375 = vxpose.xlu0.b32.cont [10/16] 0.0, 128
        %376 = vxpose.xlu0.b32.cont [11/16] 0.0, 128
        %377 = vxpose.xlu0.b32.cont [12/16] 0.0, 128
        %378 = vxpose.xlu0.b32.cont [13/16] 0.0, 128
        %379 = vxpose.xlu0.b32.cont [14/16] 0.0, 128
        %380 = vxpose.xlu0.b32.cont [15/16] 0.0, 128
        %381 = vxpose.xlu0.b32.end [16/16] 0.0, 128
        %v382 = vpop.trf.xlu0
        %v383 = vpop.trf.xlu0
        %v384 = vpop.trf.xlu0
        %v385 = vpop.trf.xlu0
        %v386 = vpop.trf.xlu0
        %v387 = vpop.trf.xlu0
        %v388 = vpop.trf.xlu0
        %v389 = vpop.trf.xlu0
        %v390 = vpop.trf.xlu0
        %v391 = vpop.trf.xlu0
        %v392 = vpop.trf.xlu0
        %v393 = vpop.trf.xlu0
        %v394 = vpop.trf.xlu0
        %v395 = vpop.trf.xlu0
        %v396 = vpop.trf.xlu0
        %v397 = vpop.trf.xlu0
        %vm398 = vcmask 130048
        %v400 = vsel %vm398, %v382, 0
        %v403 = vsel %vm398, %v383, 0
        %v406 = vsel %vm398, %v384, 0
        %v409 = vsel %vm398, %v385, 0
        %v412 = vsel %vm398, %v386, 0
        %v415 = vsel %vm398, %v387, 0
        %v418 = vsel %vm398, %v388, 0
        %v421 = vsel %vm398, %v389, 0
        %v424 = vsel %vm398, %v390, 0
        %v427 = vsel %vm398, %v391, 0
        %v430 = vsel %vm398, %v392, 0
        %v433 = vsel %vm398, %v393, 0
        %v436 = vsel %vm398, %v394, 0
        %v439 = vsel %vm398, %v395, 0
        %v442 = vsel %vm398, %v396, 0
        %v445 = vsel %vm398, %v397, 0
        %447 = vmatprep.subr.mxu0 0.0
        %448 = vmatpush1.msra.mxu0 %v362
        %449 = vmatprep.subr.mxu0 0.0
        %450 = vmatpush1.msra.mxu0 %v363
        %451 = vmatprep.subr.mxu0 0.0
        %452 = vmatpush1.msra.mxu0 0.0
        %453 = vmatprep.subr.mxu0 0.0
        %454 = vmatpush1.msra.mxu0 0.0
        %455 = vmatprep.subr.mxu0 0.0
        %456 = vmatpush1.msra.mxu0 0.0
        %457 = vmatprep.subr.mxu0 0.0
        %458 = vmatpush1.msra.mxu0 0.0
        %459 = vmatprep.subr.mxu0 0.0
        %460 = vmatpush1.msra.mxu0 0.0
        %461 = vmatprep.subr.mxu0 0.0
        %462 = vmatpush1.msra.mxu0 0.0
        %463 = vmatprep.subr.mxu0 0.0
        %464 = vmatpush1.msra.mxu0 0.0
        %465 = vmatprep.subr.mxu0 0.0
        %466 = vmatpush1.msra.mxu0 0.0
        %467 = vmatprep.subr.mxu0 0.0
        %468 = vmatpush1.msra.mxu0 0.0
        %469 = vmatprep.subr.mxu0 0.0
        %470 = vmatpush1.msra.mxu0 0.0
        %471 = vmatprep.subr.mxu0 0.0
        %472 = vmatpush1.msra.mxu0 0.0
        %473 = vmatprep.subr.mxu0 0.0
        %474 = vmatpush1.msra.mxu0 0.0
        %475 = vmatprep.subr.mxu0 0.0
        %476 = vmatpush1.msra.mxu0 0.0
        %477 = vmatprep.subr.mxu0 0.0
        %478 = vmatpush1.msra.mxu0 0.0
        %479 = vmatprep.subr.mxu0 0.0
        %480 = vmatpush1.msra.mxu0 0.0
        %481 = vmatprep.subr.mxu0 0.0
        %482 = vmatpush1.msra.mxu0 0.0
        %483 = vmatprep.subr.mxu0 0.0
        %484 = vmatpush1.msra.mxu0 0.0
        %485 = vmatprep.subr.mxu0 0.0
        %486 = vmatpush1.msra.mxu0 0.0
        %487 = vmatprep.subr.mxu0 0.0
        %488 = vmatpush1.msra.mxu0 0.0
        %489 = vmatprep.subr.mxu0 0.0
        %490 = vmatpush1.msra.mxu0 0.0
        %491 = vmatprep.subr.mxu0 0.0
        %492 = vmatpush1.msra.mxu0 0.0
        %493 = vmatprep.subr.mxu0 0.0
        %494 = vmatpush1.msra.mxu0 0.0
        %495 = vmatprep.subr.mxu0 0.0
        %496 = vmatpush1.msra.mxu0 0.0
        %497 = vmatprep.subr.mxu0 0.0
        %498 = vmatpush1.msra.mxu0 0.0
        %499 = vmatprep.subr.mxu0 0.0
        %500 = vmatpush1.msra.mxu0 0.0
        %501 = vmatprep.subr.mxu0 0.0
        %502 = vmatpush1.msra.mxu0 0.0
        %503 = vmatprep.subr.mxu0 0.0
        %504 = vmatpush1.msra.mxu0 0.0
        %505 = vmatprep.subr.mxu0 0.0
        %506 = vmatpush1.msra.mxu0 0.0
        %507 = vmatprep.subr.mxu0 0.0
        %508 = vmatpush1.msra.mxu0 0.0
        %509 = vmatprep.subr.mxu0 0.0
        %510 = vmatpush1.msra.mxu0 0.0
        %511 = vmatprep.mubr.f32.mxu0 0.0
        %512 = vmatmul.mubr.f32.gmra.mrb[0].mxu0 %v400
        %v513 = vpop.f32.mrb[0].mxu0
        %v514 = vadd.f32 0.0, %v513
        %v515 = vpop.f32.mrb[0].mxu0
        %516 = vmatprep.mubr.f32.mxu0 0.0
        %517 = vmatmul.mubr.f32.gmra.mrb[0].mxu0 %v403
        %v518 = vpop.f32.mrb[0].mxu0
        %v519 = vadd.f32 0.0, %v518
        %v520 = vpop.f32.mrb[0].mxu0
        %521 = vmatprep.mubr.f32.mxu0 0.0
        %522 = vmatmul.mubr.f32.gmra.mrb[0].mxu0 %v406
        %v523 = vpop.f32.mrb[0].mxu0
        %v524 = vadd.f32 0.0, %v523
        %v525 = vpop.f32.mrb[0].mxu0
        %526 = vmatprep.mubr.f32.mxu0 0.0
        %527 = vmatmul.mubr.f32.gmra.mrb[0].mxu0 %v409
        %v528 = vpop.f32.mrb[0].mxu0
        %v529 = vadd.f32 0.0, %v528
        %v530 = vpop.f32.mrb[0].mxu0
        %531 = vmatprep.mubr.f32.mxu0 0.0
        %532 = vmatmul.mubr.f32.gmra.mrb[0].mxu0 %v412
        %v533 = vpop.f32.mrb[0].mxu0
        %v534 = vadd.f32 0.0, %v533
        %v535 = vpop.f32.mrb[0].mxu0
        %536 = vmatprep.mubr.f32.mxu0 0.0
        %537 = vmatmul.mubr.f32.gmra.mrb[0].mxu0 %v415
        %v538 = vpop.f32.mrb[0].mxu0
        %v539 = vadd.f32 0.0, %v538
        %v540 = vpop.f32.mrb[0].mxu0
        %541 = vmatprep.mubr.f32.mxu0 0.0
        %542 = vmatmul.mubr.f32.gmra.mrb[0].mxu0 %v418
        %v543 = vpop.f32.mrb[0].mxu0
        %v544 = vadd.f32 0.0, %v543
        %v545 = vpop.f32.mrb[0].mxu0
        %546 = vmatprep.mubr.f32.mxu0 0.0
        %547 = vmatmul.mubr.f32.gmra.mrb[0].mxu0 %v421
        %v548 = vpop.f32.mrb[0].mxu0
        %v549 = vadd.f32 0.0, %v548
        %v550 = vpop.f32.mrb[0].mxu0
        %551 = vmatprep.mubr.f32.mxu0 0.0
        %552 = vmatmul.mubr.f32.gmra.mrb[0].mxu0 %v424
        %v553 = vpop.f32.mrb[0].mxu0
        %v554 = vadd.f32 0.0, %v553
        %v555 = vpop.f32.mrb[0].mxu0
        %556 = vmatprep.mubr.f32.mxu0 0.0
        %557 = vmatmul.mubr.f32.gmra.mrb[0].mxu0 %v427
        %v558 = vpop.f32.mrb[0].mxu0
        %v559 = vadd.f32 0.0, %v558
        %v560 = vpop.f32.mrb[0].mxu0
        %561 = vmatprep.mubr.f32.mxu0 0.0
        %562 = vmatmul.mubr.f32.gmra.mrb[0].mxu0 %v430
        %v563 = vpop.f32.mrb[0].mxu0
        %v564 = vadd.f32 0.0, %v563
        %v565 = vpop.f32.mrb[0].mxu0
        %566 = vmatprep.mubr.f32.mxu0 0.0
        %567 = vmatmul.mubr.f32.gmra.mrb[0].mxu0 %v433
        %v568 = vpop.f32.mrb[0].mxu0
        %v569 = vadd.f32 0.0, %v568
        %v570 = vpop.f32.mrb[0].mxu0
        %571 = vmatprep.mubr.f32.mxu0 0.0
        %572 = vmatmul.mubr.f32.gmra.mrb[0].mxu0 %v436
        %v573 = vpop.f32.mrb[0].mxu0
        %v574 = vadd.f32 0.0, %v573
        %v575 = vpop.f32.mrb[0].mxu0
        %576 = vmatprep.mubr.f32.mxu0 0.0
        %577 = vmatmul.mubr.f32.gmra.mrb[0].mxu0 %v439
        %v578 = vpop.f32.mrb[0].mxu0
        %v579 = vadd.f32 0.0, %v578
        %v580 = vpop.f32.mrb[0].mxu0
        %581 = vmatprep.mubr.f32.mxu0 0.0
        %582 = vmatmul.mubr.f32.gmra.mrb[0].mxu0 %v442
        %v583 = vpop.f32.mrb[0].mxu0
        %v584 = vadd.f32 0.0, %v583
        %v585 = vpop.f32.mrb[0].mxu0
        %586 = vmatprep.mubr.f32.mxu0 0.0
        %587 = vmatmul.mubr.f32.gmra.mrb[0].mxu0 %v445
        %v588 = vpop.f32.mrb[0].mxu0
        %v589 = vadd.f32 0.0, %v588
        %v590 = vpop.f32.mrb[0].mxu0
        %591 = vdwg.mxu0
        %592 = vxpose.xlu0.b32.start [1/16] %v356, 128
        %593 = vxpose.xlu0.b32.cont [2/16] %v357, 128
        %594 = vxpose.xlu0.b32.cont [3/16] 0.0, 128
        %595 = vxpose.xlu0.b32.cont [4/16] 0.0, 128
        %596 = vxpose.xlu0.b32.cont [5/16] 0.0, 128
        %597 = vxpose.xlu0.b32.cont [6/16] 0.0, 128
        %598 = vxpose.xlu0.b32.cont [7/16] 0.0, 128
        %599 = vxpose.xlu0.b32.cont [8/16] 0.0, 128
        %600 = vxpose.xlu0.b32.cont [9/16] 0.0, 128
        %601 = vxpose.xlu0.b32.cont [10/16] 0.0, 128
        %602 = vxpose.xlu0.b32.cont [11/16] 0.0, 128
        %603 = vxpose.xlu0.b32.cont [12/16] 0.0, 128
        %604 = vxpose.xlu0.b32.cont [13/16] 0.0, 128
        %605 = vxpose.xlu0.b32.cont [14/16] 0.0, 128
        %606 = vxpose.xlu0.b32.cont [15/16] 0.0, 128
        %607 = vxpose.xlu0.b32.end [16/16] 0.0, 128
        %v608 = vpop.trf.xlu0
        %v609 = vpop.trf.xlu0
        %v610 = vpop.trf.xlu0
        %v611 = vpop.trf.xlu0
        %v612 = vpop.trf.xlu0
        %v613 = vpop.trf.xlu0
        %v614 = vpop.trf.xlu0
        %v615 = vpop.trf.xlu0
        %v616 = vpop.trf.xlu0
        %v617 = vpop.trf.xlu0
        %v618 = vpop.trf.xlu0
        %v619 = vpop.trf.xlu0
        %v620 = vpop.trf.xlu0
        %v621 = vpop.trf.xlu0
        %v622 = vpop.trf.xlu0
        %v623 = vpop.trf.xlu0
        %v625 = vsel %vm398, %v608, 0
        %v628 = vsel %vm398, %v609, 0
        %v631 = vsel %vm398, %v610, 0
        %v634 = vsel %vm398, %v611, 0
        %v637 = vsel %vm398, %v612, 0
        %v640 = vsel %vm398, %v613, 0
        %v643 = vsel %vm398, %v614, 0
        %v646 = vsel %vm398, %v615, 0
        %v649 = vsel %vm398, %v616, 0
        %v652 = vsel %vm398, %v617, 0
        %v655 = vsel %vm398, %v618, 0
        %v658 = vsel %vm398, %v619, 0
        %v661 = vsel %vm398, %v620, 0
        %v664 = vsel %vm398, %v621, 0
        %v667 = vsel %vm398, %v622, 0
        %v670 = vsel %vm398, %v623, 0
        %672 = vmatprep.subr.mxu0 0.0
        %673 = vmatpush1.msra.mxu0 %v364
        %674 = vmatprep.subr.mxu0 0.0
        %675 = vmatpush1.msra.mxu0 %v365
        %676 = vmatprep.subr.mxu0 0.0
        %677 = vmatpush1.msra.mxu0 0.0
        %678 = vmatprep.subr.mxu0 0.0
        %679 = vmatpush1.msra.mxu0 0.0
        %680 = vmatprep.subr.mxu0 0.0
        %681 = vmatpush1.msra.mxu0 0.0
        %682 = vmatprep.subr.mxu0 0.0
        %683 = vmatpush1.msra.mxu0 0.0
        %684 = vmatprep.subr.mxu0 0.0
        %685 = vmatpush1.msra.mxu0 0.0
        %686 = vmatprep.subr.mxu0 0.0
        %687 = vmatpush1.msra.mxu0 0.0
        %688 = vmatprep.subr.mxu0 0.0
        %689 = vmatpush1.msra.mxu0 0.0
        %690 = vmatprep.subr.mxu0 0.0
        %691 = vmatpush1.msra.mxu0 0.0
        %692 = vmatprep.subr.mxu0 0.0
        %693 = vmatpush1.msra.mxu0 0.0
        %694 = vmatprep.subr.mxu0 0.0
        %695 = vmatpush1.msra.mxu0 0.0
        %696 = vmatprep.subr.mxu0 0.0
        %697 = vmatpush1.msra.mxu0 0.0
        %698 = vmatprep.subr.mxu0 0.0
        %699 = vmatpush1.msra.mxu0 0.0
        %700 = vmatprep.subr.mxu0 0.0
        %701 = vmatpush1.msra.mxu0 0.0
        %702 = vmatprep.subr.mxu0 0.0
        %703 = vmatpush1.msra.mxu0 0.0
        %704 = vmatprep.subr.mxu0 0.0
        %705 = vmatpush1.msra.mxu0 0.0
        %706 = vmatprep.subr.mxu0 0.0
        %707 = vmatpush1.msra.mxu0 0.0
        %708 = vmatprep.subr.mxu0 0.0
        %709 = vmatpush1.msra.mxu0 0.0
        %710 = vmatprep.subr.mxu0 0.0
        %711 = vmatpush1.msra.mxu0 0.0
        %712 = vmatprep.subr.mxu0 0.0
        %713 = vmatpush1.msra.mxu0 0.0
        %714 = vmatprep.subr.mxu0 0.0
        %715 = vmatpush1.msra.mxu0 0.0
        %716 = vmatprep.subr.mxu0 0.0
        %717 = vmatpush1.msra.mxu0 0.0
        %718 = vmatprep.subr.mxu0 0.0
        %719 = vmatpush1.msra.mxu0 0.0
        %720 = vmatprep.subr.mxu0 0.0
        %721 = vmatpush1.msra.mxu0 0.0
        %722 = vmatprep.subr.mxu0 0.0
        %723 = vmatpush1.msra.mxu0 0.0
        %724 = vmatprep.subr.mxu0 0.0
        %725 = vmatpush1.msra.mxu0 0.0
        %726 = vmatprep.subr.mxu0 0.0
        %727 = vmatpush1.msra.mxu0 0.0
        %728 = vmatprep.subr.mxu0 0.0
        %729 = vmatpush1.msra.mxu0 0.0
        %730 = vmatprep.subr.mxu0 0.0
        %731 = vmatpush1.msra.mxu0 0.0
        %732 = vmatprep.subr.mxu0 0.0
        %733 = vmatpush1.msra.mxu0 0.0
        %734 = vmatprep.subr.mxu0 0.0
        %735 = vmatpush1.msra.mxu0 0.0
        %736 = vmatprep.mubr.f32.mxu0 0.0
        %737 = vmatmul.mubr.f32.gmra.mrb[0].mxu0 %v625
        %v738 = vpop.f32.mrb[0].mxu0
        %v739 = vadd.f32 0.0, %v738
        %v740 = vpop.f32.mrb[0].mxu0
        %741 = vmatprep.mubr.f32.mxu0 0.0
        %742 = vmatmul.mubr.f32.gmra.mrb[0].mxu0 %v628
        %v743 = vpop.f32.mrb[0].mxu0
        %v744 = vadd.f32 0.0, %v743
        %v745 = vpop.f32.mrb[0].mxu0
        %746 = vmatprep.mubr.f32.mxu0 0.0
        %747 = vmatmul.mubr.f32.gmra.mrb[0].mxu0 %v631
        %v748 = vpop.f32.mrb[0].mxu0
        %v749 = vadd.f32 0.0, %v748
        %v750 = vpop.f32.mrb[0].mxu0
        %751 = vmatprep.mubr.f32.mxu0 0.0
        %752 = vmatmul.mubr.f32.gmra.mrb[0].mxu0 %v634
        %v753 = vpop.f32.mrb[0].mxu0
        %v754 = vadd.f32 0.0, %v753
        %v755 = vpop.f32.mrb[0].mxu0
        %756 = vmatprep.mubr.f32.mxu0 0.0
        %757 = vmatmul.mubr.f32.gmra.mrb[0].mxu0 %v637
        %v758 = vpop.f32.mrb[0].mxu0
        %v759 = vadd.f32 0.0, %v758
        %v760 = vpop.f32.mrb[0].mxu0
        %761 = vmatprep.mubr.f32.mxu0 0.0
        %762 = vmatmul.mubr.f32.gmra.mrb[0].mxu0 %v640
        %v763 = vpop.f32.mrb[0].mxu0
        %v764 = vadd.f32 0.0, %v763
        %v765 = vpop.f32.mrb[0].mxu0
        %766 = vmatprep.mubr.f32.mxu0 0.0
        %767 = vmatmul.mubr.f32.gmra.mrb[0].mxu0 %v643
        %v768 = vpop.f32.mrb[0].mxu0
        %v769 = vadd.f32 0.0, %v768
        %v770 = vpop.f32.mrb[0].mxu0
        %771 = vmatprep.mubr.f32.mxu0 0.0
        %772 = vmatmul.mubr.f32.gmra.mrb[0].mxu0 %v646
        %v773 = vpop.f32.mrb[0].mxu0
        %v774 = vadd.f32 0.0, %v773
        %v775 = vpop.f32.mrb[0].mxu0
        %776 = vmatprep.mubr.f32.mxu0 0.0
        %777 = vmatmul.mubr.f32.gmra.mrb[0].mxu0 %v649
        %v778 = vpop.f32.mrb[0].mxu0
        %v779 = vadd.f32 0.0, %v778
        %v780 = vpop.f32.mrb[0].mxu0
        %781 = vmatprep.mubr.f32.mxu0 0.0
        %782 = vmatmul.mubr.f32.gmra.mrb[0].mxu0 %v652
        %v783 = vpop.f32.mrb[0].mxu0
        %v784 = vadd.f32 0.0, %v783
        %v785 = vpop.f32.mrb[0].mxu0
        %786 = vmatprep.mubr.f32.mxu0 0.0
        %787 = vmatmul.mubr.f32.gmra.mrb[0].mxu0 %v655
        %v788 = vpop.f32.mrb[0].mxu0
        %v789 = vadd.f32 0.0, %v788
        %v790 = vpop.f32.mrb[0].mxu0
        %791 = vmatprep.mubr.f32.mxu0 0.0
        %792 = vmatmul.mubr.f32.gmra.mrb[0].mxu0 %v658
        %v793 = vpop.f32.mrb[0].mxu0
        %v794 = vadd.f32 0.0, %v793
        %v795 = vpop.f32.mrb[0].mxu0
        %796 = vmatprep.mubr.f32.mxu0 0.0
        %797 = vmatmul.mubr.f32.gmra.mrb[0].mxu0 %v661
        %v798 = vpop.f32.mrb[0].mxu0
        %v799 = vadd.f32 0.0, %v798
        %v800 = vpop.f32.mrb[0].mxu0
        %801 = vmatprep.mubr.f32.mxu0 0.0
        %802 = vmatmul.mubr.f32.gmra.mrb[0].mxu0 %v664
        %v803 = vpop.f32.mrb[0].mxu0
        %v804 = vadd.f32 0.0, %v803
        %v805 = vpop.f32.mrb[0].mxu0
        %806 = vmatprep.mubr.f32.mxu0 0.0
        %807 = vmatmul.mubr.f32.gmra.mrb[0].mxu0 %v667
        %v808 = vpop.f32.mrb[0].mxu0
        %v809 = vadd.f32 0.0, %v808
        %v810 = vpop.f32.mrb[0].mxu0
        %811 = vmatprep.mubr.f32.mxu0 0.0
        %812 = vmatmul.mubr.f32.gmra.mrb[0].mxu0 %v670
        %v813 = vpop.f32.mrb[0].mxu0
        %v814 = vadd.f32 0.0, %v813
        %v815 = vpop.f32.mrb[0].mxu0
        %816 = vdwg.mxu0
        %v817 = vlaneseq
        %v818 = vshrl.u32 %v817, 7
        %v819 = vadd.s32 %v818, 8
        %v820 = vadd.s32 %v818, 16
        %v821 = vadd.s32 %v818, 24
        %v822 = vadd.s32 %v818, 32
        %v823 = vadd.s32 %v818, 40
        %v824 = vadd.s32 %v818, 48
        %v825 = vadd.s32 %v818, 56
        %v826 = vadd.s32 %v818, 64
        %v827 = vadd.s32 %v818, 72
        %v828 = vadd.s32 %v818, 80
        %v829 = vadd.s32 %v818, 88
        %v830 = vadd.s32 %v818, 96
        %v831 = vadd.s32 %v818, 104
        %v832 = vadd.s32 %v818, 112
        %v833 = vadd.s32 %v818, 120
        %vm834 = vcmp.lt.s32.totalorder %v818, 8
        %vm835 = vcmp.lt.s32.totalorder %v819, 8
        %vm836 = vcmp.lt.s32.totalorder %v820, 8
        %vm837 = vcmp.lt.s32.totalorder %v821, 8
        %vm838 = vcmp.lt.s32.totalorder %v822, 8
        %vm839 = vcmp.lt.s32.totalorder %v823, 8
        %vm840 = vcmp.lt.s32.totalorder %v824, 8
        %vm841 = vcmp.lt.s32.totalorder %v825, 8
        %vm842 = vcmp.lt.s32.totalorder %v826, 8
        %vm843 = vcmp.lt.s32.totalorder %v827, 8
        %vm844 = vcmp.lt.s32.totalorder %v828, 8
        %vm845 = vcmp.lt.s32.totalorder %v829, 8
        %vm846 = vcmp.lt.s32.totalorder %v830, 8
        %vm847 = vcmp.lt.s32.totalorder %v831, 8
        %vm848 = vcmp.lt.s32.totalorder %v832, 8
        %vm849 = vcmp.lt.s32.totalorder %v833, 8
        %v850 = vsel %vm834, %v514, -1e+30
        %v851 = vsel %vm835, %v519, -1e+30
        %v852 = vsel %vm836, %v524, -1e+30
        %v853 = vsel %vm837, %v529, -1e+30
        %v854 = vsel %vm838, %v534, -1e+30
        %v855 = vsel %vm839, %v539, -1e+30
        %v856 = vsel %vm840, %v544, -1e+30
        %v857 = vsel %vm841, %v549, -1e+30
        %v858 = vsel %vm842, %v554, -1e+30
        %v859 = vsel %vm843, %v559, -1e+30
        %v860 = vsel %vm844, %v564, -1e+30
        %v861 = vsel %vm845, %v569, -1e+30
        %v862 = vsel %vm846, %v574, -1e+30
        %v863 = vsel %vm847, %v579, -1e+30
        %v864 = vsel %vm848, %v584, -1e+30
        %v865 = vsel %vm849, %v589, -1e+30
        %v866 = vsel %vm834, %v739, -1e+30
        %v867 = vsel %vm835, %v744, -1e+30
        %v868 = vsel %vm836, %v749, -1e+30
        %v869 = vsel %vm837, %v754, -1e+30
        %v870 = vsel %vm838, %v759, -1e+30
        %v871 = vsel %vm839, %v764, -1e+30
        %v872 = vsel %vm840, %v769, -1e+30
        %v873 = vsel %vm841, %v774, -1e+30
        %v874 = vsel %vm842, %v779, -1e+30
        %v875 = vsel %vm843, %v784, -1e+30
        %v876 = vsel %vm844, %v789, -1e+30
        %v877 = vsel %vm845, %v794, -1e+30
        %v878 = vsel %vm846, %v799, -1e+30
        %v879 = vsel %vm847, %v804, -1e+30
        %v880 = vsel %vm848, %v809, -1e+30
        %v881 = vsel %vm849, %v814, -1e+30
        %v882 = vmax.f32 %v850, %v852
        %v883 = vmax.f32 %v851, %v853
        %v884 = vmax.f32 %v882, %v854
        %v885 = vmax.f32 %v883, %v855
        %v886 = vmax.f32 %v884, %v856
        %v887 = vmax.f32 %v885, %v857
        %v888 = vmax.f32 %v886, %v858
        %v889 = vmax.f32 %v887, %v859
        %v890 = vmax.f32 %v888, %v860
        %v891 = vmax.f32 %v889, %v861
        %v892 = vmax.f32 %v890, %v862
        %v893 = vmax.f32 %v891, %v863
        %v894 = vmax.f32 %v892, %v864
        %v895 = vmax.f32 %v893, %v865
        %v896 = vmax.f32 %v894, %v895
        %v897 = vrot.slane %v896, 4
        %v898 = vmax.f32 %v896, %v897
        %v899 = vrot.slane %v898, 2
        %v900 = vmax.f32 %v898, %v899
        %v901 = vrot.slane %v900, 1
        %v902 = vmax.f32 %v900, %v901
        %v903 = vmax.f32 %v866, %v868
        %v904 = vmax.f32 %v867, %v869
        %v905 = vmax.f32 %v903, %v870
        %v906 = vmax.f32 %v904, %v871
        %v907 = vmax.f32 %v905, %v872
        %v908 = vmax.f32 %v906, %v873
        %v909 = vmax.f32 %v907, %v874
        %v910 = vmax.f32 %v908, %v875
        %v911 = vmax.f32 %v909, %v876
        %v912 = vmax.f32 %v910, %v877
        %v913 = vmax.f32 %v911, %v878
        %v914 = vmax.f32 %v912, %v879
        %v915 = vmax.f32 %v913, %v880
        %v916 = vmax.f32 %v914, %v881
        %v917 = vmax.f32 %v915, %v916
        %v918 = vrot.slane %v917, 4
        %v919 = vmax.f32 %v917, %v918
        %v920 = vrot.slane %v919, 2
        %v921 = vmax.f32 %v919, %v920
        %v922 = vrot.slane %v921, 1
        %v923 = vmax.f32 %v921, %v922
        %v924 = vsub.f32 %v850, %v902
        %v925 = vsub.f32 %v851, %v902
        %v926 = vsub.f32 %v852, %v902
        %v927 = vsub.f32 %v853, %v902
        %v928 = vsub.f32 %v854, %v902
        %v929 = vsub.f32 %v855, %v902
        %v930 = vsub.f32 %v856, %v902
        %v931 = vsub.f32 %v857, %v902
        %v932 = vsub.f32 %v858, %v902
        %v933 = vsub.f32 %v859, %v902
        %v934 = vsub.f32 %v860, %v902
        %v935 = vsub.f32 %v861, %v902
        %v936 = vsub.f32 %v862, %v902
        %v937 = vsub.f32 %v863, %v902
        %v938 = vsub.f32 %v864, %v902
        %v939 = vsub.f32 %v865, %v902
        %v940 = vsub.f32 %v866, %v923
        %v941 = vsub.f32 %v867, %v923
        %v942 = vsub.f32 %v868, %v923
        %v943 = vsub.f32 %v869, %v923
        %v944 = vsub.f32 %v870, %v923
        %v945 = vsub.f32 %v871, %v923
        %v946 = vsub.f32 %v872, %v923
        %v947 = vsub.f32 %v873, %v923
        %v948 = vsub.f32 %v874, %v923
        %v949 = vsub.f32 %v875, %v923
        %v950 = vsub.f32 %v876, %v923
        %v951 = vsub.f32 %v877, %v923
        %v952 = vsub.f32 %v878, %v923
        %v953 = vsub.f32 %v879, %v923
        %v954 = vsub.f32 %v880, %v923
        %v955 = vsub.f32 %v881, %v923
        %v956 = vmul.f32 %v924, 1.442695
        %v957 = vpow.pop %v956
        %v958 = vmul.f32 %v925, 1.442695
        %v959 = vpow.pop %v958
        %v960 = vmul.f32 %v926, 1.442695
        %v961 = vpow.pop %v960
        %v962 = vmul.f32 %v927, 1.442695
        %v963 = vpow.pop %v962
        %v964 = vmul.f32 %v928, 1.442695
        %v965 = vpow.pop %v964
        %v966 = vmul.f32 %v929, 1.442695
        %v967 = vpow.pop %v966
        %v968 = vmul.f32 %v930, 1.442695
        %v969 = vpow.pop %v968
        %v970 = vmul.f32 %v931, 1.442695
        %v971 = vpow.pop %v970
        %v972 = vmul.f32 %v932, 1.442695
        %v973 = vpow.pop %v972
        %v974 = vmul.f32 %v933, 1.442695
        %v975 = vpow.pop %v974
        %v976 = vmul.f32 %v934, 1.442695
        %v977 = vpow.pop %v976
        %v978 = vmul.f32 %v935, 1.442695
        %v979 = vpow.pop %v978
        %v980 = vmul.f32 %v936, 1.442695
        %v981 = vpow.pop %v980
        %v982 = vmul.f32 %v937, 1.442695
        %v983 = vpow.pop %v982
        %v984 = vmul.f32 %v938, 1.442695
        %v985 = vpow.pop %v984
        %v986 = vmul.f32 %v939, 1.442695
        %v987 = vpow.pop %v986
        %v988 = vmul.f32 %v940, 1.442695
        %v989 = vpow.pop %v988
        %v990 = vmul.f32 %v941, 1.442695
        %v991 = vpow.pop %v990
        %v992 = vmul.f32 %v942, 1.442695
        %v993 = vpow.pop %v992
        %v994 = vmul.f32 %v943, 1.442695
        %v995 = vpow.pop %v994
        %v996 = vmul.f32 %v944, 1.442695
        %v997 = vpow.pop %v996
        %v998 = vmul.f32 %v945, 1.442695
        %v999 = vpow.pop %v998
        %v1000 = vmul.f32 %v946, 1.442695
        %v1001 = vpow.pop %v1000
        %v1002 = vmul.f32 %v947, 1.442695
        %v1003 = vpow.pop %v1002
        %v1004 = vmul.f32 %v948, 1.442695
        %v1005 = vpow.pop %v1004
        %v1006 = vmul.f32 %v949, 1.442695
        %v1007 = vpow.pop %v1006
        %v1008 = vmul.f32 %v950, 1.442695
        %v1009 = vpow.pop %v1008
        %v1010 = vmul.f32 %v951, 1.442695
        %v1011 = vpow.pop %v1010
        %v1012 = vmul.f32 %v952, 1.442695
        %v1013 = vpow.pop %v1012
        %v1014 = vmul.f32 %v953, 1.442695
        %v1015 = vpow.pop %v1014
        %v1016 = vmul.f32 %v954, 1.442695
        %v1017 = vpow.pop %v1016
        %v1018 = vmul.f32 %v955, 1.442695
        %v1019 = vpow.pop %v1018
        %v1020 = vadd.f32 %v957, %v959
        %v1021 = vadd.f32 %v1020, %v961
        %v1022 = vadd.f32 %v1021, %v963
        %v1023 = vadd.f32 %v1022, %v965
        %v1024 = vadd.f32 %v1023, %v967
        %v1025 = vadd.f32 %v1024, %v969
        %v1026 = vadd.f32 %v1025, %v971
        %v1027 = vadd.f32 %v1026, %v973
        %v1028 = vadd.f32 %v1027, %v975
        %v1029 = vadd.f32 %v1028, %v977
        %v1030 = vadd.f32 %v1029, %v979
        %v1031 = vadd.f32 %v1030, %v981
        %v1032 = vadd.f32 %v1031, %v983
        %v1033 = vadd.f32 %v1032, %v985
        %v1034 = vadd.f32 %v1033, %v987
        %v1035 = vrot.slane %v1034, 4
        %v1036 = vadd.f32 %v1034, %v1035
        %v1037 = vrot.slane %v1036, 2
        %v1038 = vadd.f32 %v1036, %v1037
        %v1039 = vrot.slane %v1038, 1
        %v1040 = vadd.f32 %v1038, %v1039
        %v1041 = vadd.f32 %v989, %v991
        %v1042 = vadd.f32 %v1041, %v993
        %v1043 = vadd.f32 %v1042, %v995
        %v1044 = vadd.f32 %v1043, %v997
        %v1045 = vadd.f32 %v1044, %v999
        %v1046 = vadd.f32 %v1045, %v1001
        %v1047 = vadd.f32 %v1046, %v1003
        %v1048 = vadd.f32 %v1047, %v1005
        %v1049 = vadd.f32 %v1048, %v1007
        %v1050 = vadd.f32 %v1049, %v1009
        %v1051 = vadd.f32 %v1050, %v1011
        %v1052 = vadd.f32 %v1051, %v1013
        %v1053 = vadd.f32 %v1052, %v1015
        %v1054 = vadd.f32 %v1053, %v1017
        %v1055 = vadd.f32 %v1054, %v1019
        %v1056 = vrot.slane %v1055, 4
        %v1057 = vadd.f32 %v1055, %v1056
        %v1058 = vrot.slane %v1057, 2
        %v1059 = vadd.f32 %v1057, %v1058
        %v1060 = vrot.slane %v1059, 1
        %v1061 = vadd.f32 %v1059, %v1060
        %1062 = vmatprep.subr.mxu0 0.0
        %1063 = vmatpush1.msra.mxu0 %v957
        %1064 = vmatprep.subr.mxu0 0.0
        %1065 = vmatpush1.msra.mxu0 %v959
        %1066 = vmatprep.subr.mxu0 0.0
        %1067 = vmatpush1.msra.mxu0 %v961
        %1068 = vmatprep.subr.mxu0 0.0
        %1069 = vmatpush1.msra.mxu0 %v963
        %1070 = vmatprep.subr.mxu0 0.0
        %1071 = vmatpush1.msra.mxu0 %v965
        %1072 = vmatprep.subr.mxu0 0.0
        %1073 = vmatpush1.msra.mxu0 %v967
        %1074 = vmatprep.subr.mxu0 0.0
        %1075 = vmatpush1.msra.mxu0 %v969
        %1076 = vmatprep.subr.mxu0 0.0
        %1077 = vmatpush1.msra.mxu0 %v971
        %1078 = vmatprep.subr.mxu0 0.0
        %1079 = vmatpush1.msra.mxu0 %v973
        %1080 = vmatprep.subr.mxu0 0.0
        %1081 = vmatpush1.msra.mxu0 %v975
        %1082 = vmatprep.subr.mxu0 0.0
        %1083 = vmatpush1.msra.mxu0 %v977
        %1084 = vmatprep.subr.mxu0 0.0
        %1085 = vmatpush1.msra.mxu0 %v979
        %1086 = vmatprep.subr.mxu0 0.0
        %1087 = vmatpush1.msra.mxu0 %v981
        %1088 = vmatprep.subr.mxu0 0.0
        %1089 = vmatpush1.msra.mxu0 %v983
        %1090 = vmatprep.subr.mxu0 0.0
        %1091 = vmatpush1.msra.mxu0 %v985
        %1092 = vmatprep.subr.mxu0 0.0
        %1093 = vmatpush1.msra.mxu0 %v987
        %1094 = vmatprep.subr.mxu0 0.0
        %1095 = vmatpush1.msra.mxu0 0.0
        %1096 = vmatprep.subr.mxu0 0.0
        %1097 = vmatpush1.msra.mxu0 0.0
        %1098 = vmatprep.subr.mxu0 0.0
        %1099 = vmatpush1.msra.mxu0 0.0
        %1100 = vmatprep.subr.mxu0 0.0
        %1101 = vmatpush1.msra.mxu0 0.0
        %1102 = vmatprep.subr.mxu0 0.0
        %1103 = vmatpush1.msra.mxu0 0.0
        %1104 = vmatprep.subr.mxu0 0.0
        %1105 = vmatpush1.msra.mxu0 0.0
        %1106 = vmatprep.subr.mxu0 0.0
        %1107 = vmatpush1.msra.mxu0 0.0
        %1108 = vmatprep.subr.mxu0 0.0
        %1109 = vmatpush1.msra.mxu0 0.0
        %1110 = vmatprep.subr.mxu0 0.0
        %1111 = vmatpush1.msra.mxu0 0.0
        %1112 = vmatprep.subr.mxu0 0.0
        %1113 = vmatpush1.msra.mxu0 0.0
        %1114 = vmatprep.subr.mxu0 0.0
        %1115 = vmatpush1.msra.mxu0 0.0
        %1116 = vmatprep.subr.mxu0 0.0
        %1117 = vmatpush1.msra.mxu0 0.0
        %1118 = vmatprep.subr.mxu0 0.0
        %1119 = vmatpush1.msra.mxu0 0.0
        %1120 = vmatprep.subr.mxu0 0.0
        %1121 = vmatpush1.msra.mxu0 0.0
        %1122 = vmatprep.subr.mxu0 0.0
        %1123 = vmatpush1.msra.mxu0 0.0
        %1124 = vmatprep.subr.mxu0 0.0
        %1125 = vmatpush1.msra.mxu0 0.0
        %1126 = vmatprep.mubr.f32.mxu0 0.0
        %1127 = vmatmul.mubr.f32.gmra.mrb[0].mxu0 %v358
        %v1128 = vpop.f32.mrb[0].mxu0
        %v1129 = vadd.f32 0.0, %v1128
        %v1130 = vpop.f32.mrb[0].mxu0
        %1131 = vmatprep.mubr.f32.mxu0 0.0
        %1132 = vmatmul.mubr.f32.gmra.mrb[0].mxu0 %v359
        %v1133 = vpop.f32.mrb[0].mxu0
        %v1134 = vadd.f32 0.0, %v1133
        %v1135 = vpop.f32.mrb[0].mxu0
        %1136 = vdwg.mxu0
        %1137 = vmatprep.subr.mxu0 0.0
        %1138 = vmatpush1.msra.mxu0 %v989
        %1139 = vmatprep.subr.mxu0 0.0
        %1140 = vmatpush1.msra.mxu0 %v991
        %1141 = vmatprep.subr.mxu0 0.0
        %1142 = vmatpush1.msra.mxu0 %v993
        %1143 = vmatprep.subr.mxu0 0.0
        %1144 = vmatpush1.msra.mxu0 %v995
        %1145 = vmatprep.subr.mxu0 0.0
        %1146 = vmatpush1.msra.mxu0 %v997
        %1147 = vmatprep.subr.mxu0 0.0
        %1148 = vmatpush1.msra.mxu0 %v999
        %1149 = vmatprep.subr.mxu0 0.0
        %1150 = vmatpush1.msra.mxu0 %v1001
        %1151 = vmatprep.subr.mxu0 0.0
        %1152 = vmatpush1.msra.mxu0 %v1003
        %1153 = vmatprep.subr.mxu0 0.0
        %1154 = vmatpush1.msra.mxu0 %v1005
        %1155 = vmatprep.subr.mxu0 0.0
        %1156 = vmatpush1.msra.mxu0 %v1007
        %1157 = vmatprep.subr.mxu0 0.0
        %1158 = vmatpush1.msra.mxu0 %v1009
        %1159 = vmatprep.subr.mxu0 0.0
        %1160 = vmatpush1.msra.mxu0 %v1011
        %1161 = vmatprep.subr.mxu0 0.0
        %1162 = vmatpush1.msra.mxu0 %v1013
        %1163 = vmatprep.subr.mxu0 0.0
        %1164 = vmatpush1.msra.mxu0 %v1015
        %1165 = vmatprep.subr.mxu0 0.0
        %1166 = vmatpush1.msra.mxu0 %v1017
        %1167 = vmatprep.subr.mxu0 0.0
        %1168 = vmatpush1.msra.mxu0 %v1019
        %1169 = vmatprep.subr.mxu0 0.0
        %1170 = vmatpush1.msra.mxu0 0.0
        %1171 = vmatprep.subr.mxu0 0.0
        %1172 = vmatpush1.msra.mxu0 0.0
        %1173 = vmatprep.subr.mxu0 0.0
        %1174 = vmatpush1.msra.mxu0 0.0
        %1175 = vmatprep.subr.mxu0 0.0
        %1176 = vmatpush1.msra.mxu0 0.0
        %1177 = vmatprep.subr.mxu0 0.0
        %1178 = vmatpush1.msra.mxu0 0.0
        %1179 = vmatprep.subr.mxu0 0.0
        %1180 = vmatpush1.msra.mxu0 0.0
        %1181 = vmatprep.subr.mxu0 0.0
        %1182 = vmatpush1.msra.mxu0 0.0
        %1183 = vmatprep.subr.mxu0 0.0
        %1184 = vmatpush1.msra.mxu0 0.0
        %1185 = vmatprep.subr.mxu0 0.0
        %1186 = vmatpush1.msra.mxu0 0.0
        %1187 = vmatprep.subr.mxu0 0.0
        %1188 = vmatpush1.msra.mxu0 0.0
        %1189 = vmatprep.subr.mxu0 0.0
        %1190 = vmatpush1.msra.mxu0 0.0
        %1191 = vmatprep.subr.mxu0 0.0
        %1192 = vmatpush1.msra.mxu0 0.0
        %1193 = vmatprep.subr.mxu0 0.0
        %1194 = vmatpush1.msra.mxu0 0.0
        %1195 = vmatprep.subr.mxu0 0.0
        %1196 = vmatpush1.msra.mxu0 0.0
        %1197 = vmatprep.subr.mxu0 0.0
        %1198 = vmatpush1.msra.mxu0 0.0
        %1199 = vmatprep.subr.mxu0 0.0
        %1200 = vmatpush1.msra.mxu0 0.0
        %1201 = vmatprep.mubr.f32.mxu0 0.0
        %1202 = vmatmul.mubr.f32.gmra.mrb[0].mxu0 %v360
        %v1203 = vpop.f32.mrb[0].mxu0
        %v1204 = vadd.f32 0.0, %v1203
        %v1205 = vpop.f32.mrb[0].mxu0
        %1206 = vmatprep.mubr.f32.mxu0 0.0
        %1207 = vmatmul.mubr.f32.gmra.mrb[0].mxu0 %v361
        %v1208 = vpop.f32.mrb[0].mxu0
        %v1209 = vadd.f32 0.0, %v1208
        %v1210 = vpop.f32.mrb[0].mxu0
        %1211 = vdwg.mxu0
        %v1212 = vrcp.pop %v1040
        %v1213 = vmul.f32 %v1129, %v1212
        %v1214 = vmul.f32 %v1134, %v1212
        %v1215 = vrcp.pop %v1061
        %v1216 = vmul.f32 %v1204, %v1215
        %v1217 = vmul.f32 %v1209, %v1215
        %1218 = vst [vmem:[%s345] sm:$0xff] %v1213
        %1219 = vst [vmem:[%s345 + $0x8] sm:$0xff] %v1214
        %1220 = vst [vmem:[%s345 + $0x10] sm:$0xff] %v1216
        %1221 = vst [vmem:[%s345 + $0x18] sm:$0xff] %v1217
        %s1222 = sand.u32 %s109, 1
        %s1223 = scalar_lea.sflag [#allocation4], %s1222
        %s1224 = sand.u32 %s109, 1
        %s1225 = smul.addr %s1224, 32
        %s1226 = scalar_lea.vmem [#allocation8], %s1225
        // Predicated region
        $region45: #{tpu_custom_call.1} parent=31 // pred_check
          %p1227 = pneg %p119
        $region46: #{tpu_custom_call.1} parent=31 // pred_check_branch
          %1229 = sbr.rel (%p1227) target = $region48
        $region47: #{tpu_custom_call.1} parent=31 // pred_region
          %s1230 = smul.u32 2, %s23
          %s1232 = ssub.s32 512, 512
          %1233 = vsyncadd %s1223, %s1232
          %s1234 = smul.addr %s1230, 2
          %s1235 = smul.addr %s1234, 128
          %s1236 = scalar_lea.hbm %s3, %s1235
          %s1237 = sshll.u32 %s1226, 4
          %s1238 = int_to_ptr.vmem [resolvable:$true] %s1237
          %1243 = dma.vmem_to_hbm [thread:$0]  %s1238, 512, %s1236, %s1223, 128, 128, 8
        $region48: #{tpu_custom_call.1} parent=31 // pred_fallthru
          _
      $region32: #{tpu_custom_call.1} parent=5 // pred_fallthru
        _
      %p1244 = scmp.le.s32.totalorder 2, %s18
      // Predicated region
      $region49: #{tpu_custom_call.1} parent=5 // pred_check
        %p1245 = pneg %p1244
      $region50: #{tpu_custom_call.1} parent=5 // pred_check_branch
        %1247 = sbr.rel (%p1245) target = $region52
      $region51: #{tpu_custom_call.1} parent=5 // pred_region
        %s1248 = ssub.s32 %s18, 2
        // Predicated region
        $region53: #{tpu_custom_call.1} parent=51 // pred_check
          %p1249 = pneg %p125
        $region54: #{tpu_custom_call.1} parent=51 // pred_check_branch
          %1251 = sbr.rel (%p1249) target = $region56
        $region55: #{tpu_custom_call.1} parent=51 // pred_region
          %s1252 = sand.u32 %s110, 1
          %s1253 = scalar_lea.sflag [#allocation4], %s1252
          %s1254 = sand.u32 %s110, 1
          %s1255 = smul.addr %s1254, 32
          %s1256 = scalar_lea.vmem [#allocation8], %s1255
          %1257 = dma.done %s1253, 512
        $region56: #{tpu_custom_call.1} parent=51 // pred_fallthru
          _
      $region52: #{tpu_custom_call.1} parent=5 // pred_fallthru
        _
    $region6: #{tpu_custom_call.1} parent=1 // loop_footer
      %s22 = sadd.s32 1, %s18
    $region7: #{tpu_custom_call.1} parent=1 // loop_footer_branch
      %17 = sbr.rel target = $region3
    $region8: #{tpu_custom_call.1} parent=1 // loop_exit
      _
    %1258 = vsyncpa [#allocation3], 1
    %s1259 = scalar_lea.sflag [#allocation3], 1
    %1260 = vsyncpa %s1259, 1
    %1261 = vsyncpa [#allocation6], 1
    %s1262 = scalar_lea.sflag [#allocation6], 1
    %1263 = vsyncpa %s1262, 1
    %1264 = vsyncpa [#allocation4], 1
    %s1265 = scalar_lea.sflag [#allocation4], 1
    %1266 = vsyncpa %s1265, 1

</llo_original>
